<compile_context>
chip_gen: v5e
topology: v5e:2x2
jax: 0.10.0
libtpu: 0.0.40
codegen_flags: <defaults>
</compile_context>

<pallas_src>
import jax
import jax.numpy as jnp
import numpy as np
from jax.experimental import pallas as pl
from jax.experimental.pallas import tpu as pltpu


def _round_up(x, m):
    return ((x + m - 1) // m) * m


def _dice_partial_kernel(p_ref, t_ref, oi_ref, op_ref, ot_ref,
                         acc_i, acc_p, acc_t):
    """Per grid step: accumulate per-class partial sums over a lane tile.

    p_ref : (B, C, TR) float logits/probabilities
    t_ref : (B, TR)    int32 class labels (padded lanes hold -1)
    o*_ref: (1, C, 1)  per-split reduced outputs (intersection / pred / truth)
    acc_* : (C, TR)    f32 vectorized accumulators (per-core VMEM scratch)
    """
    j = pl.program_id(1)

    @pl.when(j == 0)
    def _():
        acc_i[...] = jnp.zeros_like(acc_i)
        acc_p[...] = jnp.zeros_like(acc_p)
        acc_t[...] = jnp.zeros_like(acc_t)

    p = p_ref[...].astype(jnp.float32)            # (B, C, TR)
    t = t_ref[...]                                # (B, TR) int32

    # one-hot along the (small) class/sublane axis; padded lanes have t == -1
    # which never matches, so they contribute nothing.
    cls = jax.lax.broadcasted_iota(jnp.int32, p.shape, 1)         # (B, C, TR)
    onehot = (cls == t[:, None, :]).astype(jnp.float32)           # (B, C, TR)

    # reduce only over the small batch axis here (cheap vreg adds);
    # lane reduction is deferred to the flush step.
    acc_i[...] += jnp.sum(p * onehot, axis=0)     # intersection partials
    acc_p[...] += jnp.sum(p, axis=0)              # prediction-sum partials
    acc_t[...] += jnp.sum(onehot, axis=0)         # truth-count partials

    @pl.when(j == pl.num_programs(1) - 1)
    def _():
        oi_ref[...] = jnp.sum(acc_i[...], axis=-1, keepdims=True)[None]
        op_ref[...] = jnp.sum(acc_p[...], axis=-1, keepdims=True)[None]
        ot_ref[...] = jnp.sum(acc_t[...], axis=-1, keepdims=True)[None]


def dice_loss(prediction, truth, smoothing=1e-6, num_classes=None,
              *, tr=2048, n_splits=2):
    """Dice loss.

    prediction: (B, C, H, W) float, truth: (B, H, W) int. Returns a scalar.
    """
    B, C, H, W = prediction.shape
    if num_classes is not None and num_classes != C:
        raise ValueError("num_classes must match prediction channel dim")
    HW = H * W

    # Pure reshapes -- no NCHW->NHWC transpose, no extra HBM round-trip.
    p = prediction.reshape(B, C, HW)
    t = truth.reshape(B, HW).astype(jnp.int32)

    # Lane tile: as large as requested but no larger than the (128-rounded)
    # per-split spatial extent, so tiny inputs don't over-pad.
    tr = max(128, min(tr, _round_up(pl.cdiv(HW, n_splits), 128)))
    HWp = _round_up(HW, n_splits * tr)
    pad = HWp - HW
    if pad:
        p = jnp.pad(p, ((0, 0), (0, 0), (0, pad)))
        t = jnp.pad(t, ((0, 0), (0, pad)), constant_values=-1)
    tiles_per_split = HWp // (n_splits * tr)

    out_struct = jax.ShapeDtypeStruct((n_splits, C, 1), jnp.float32)
    out_spec = pl.BlockSpec((1, C, 1), lambda s, j: (s, 0, 0))

    inter, psum, tsum = pl.pallas_call(
        _dice_partial_kernel,
        out_shape=(out_struct, out_struct, out_struct),
        grid_spec=pltpu.PrefetchScalarGridSpec(
            num_scalar_prefetch=0,
            grid=(n_splits, tiles_per_split),
            in_specs=[
                pl.BlockSpec((B, C, tr),
                             lambda s, j: (0, 0, s * tiles_per_split + j)),
                pl.BlockSpec((B, tr),
                             lambda s, j: (0, s * tiles_per_split + j)),
            ],
            out_specs=(out_spec, out_spec, out_spec),
            scratch_shapes=[pltpu.VMEM((C, tr), jnp.float32)] * 3,
        ),
        compiler_params=pltpu.CompilerParams(
            dimension_semantics=("parallel", "arbitrary")),
    )(p, t)

    # Tiny final arithmetic over (n_splits, C) partials done in the wrapper.
    I = jnp.sum(inter[..., 0], axis=0)            # (C,)
    P = jnp.sum(psum[..., 0], axis=0)             # (C,)
    T = jnp.sum(tsum[..., 0], axis=0)             # (C,)
    dice = (2.0 * I + smoothing) / (P + T + smoothing)
    return jnp.mean(1.0 - dice)


def _ref_dice_loss(prediction, truth, smoothing=1e-6, num_classes=1):
    """Pure-JAX port of the PyTorch DiceLoss.forward."""
    onehot = jax.nn.one_hot(truth, num_classes, dtype=jnp.float32)  # (B,H,W,C)
    onehot = jnp.transpose(onehot, (0, 3, 1, 2))                    # (B,C,H,W)
    total = 0.0
    for i in range(num_classes):
        p_i = prediction[:, i, :, :].reshape(-1)
        t_i = onehot[:, i, :, :].reshape(-1)
        intersection = jnp.sum(p_i * t_i)
        dice = (2.0 * intersection + smoothing) / (
            jnp.sum(p_i) + jnp.sum(t_i) + smoothing)
        total = total + (1.0 - dice)
    return total / num_classes


if __name__ == "__main__":
    key = jax.random.PRNGKey(0)
    k1, k2 = jax.random.split(key)

    N, C, H, W = 2, 4, 16, 16
    prediction = jax.random.uniform(k1, (N, C, H, W), dtype=jnp.float32)
    truth = jax.random.randint(k2, (N, H, W), 0, C, dtype=jnp.int32)

    out = dice_loss(prediction, truth, smoothing=1e-6, num_classes=C)
    out = jax.block_until_ready(out)

    ref = _ref_dice_loss(prediction, truth, smoothing=1e-6, num_classes=C)
    np.testing.assert_allclose(np.asarray(out), np.asarray(ref),
                               rtol=1e-5, atol=1e-6)
    print("KERNEL_OK")
</pallas_src>

<mosaic_0001>
module attributes {stable_mosaic.version = 11 : i64} {
  func.func @_dice_partial_kernel(%arg0: i32, %arg1: i32, %arg2: memref<2x4x128xf32, #tpu.memory_space<vmem>>, %arg3: memref<2x128xi32, #tpu.memory_space<vmem>>, %arg4: memref<1x4x1xf32, #tpu.memory_space<vmem>>, %arg5: memref<1x4x1xf32, #tpu.memory_space<vmem>>, %arg6: memref<1x4x1xf32, #tpu.memory_space<vmem>>, %arg7: memref<4x128xf32, #tpu.memory_space<vmem>>, %arg8: memref<4x128xf32, #tpu.memory_space<vmem>>, %arg9: memref<4x128xf32, #tpu.memory_space<vmem>>) attributes {dimension_semantics = [#tpu.dimension_semantics<parallel>, #tpu.dimension_semantics<arbitrary>], iteration_bounds = array<i64: 2, 1>, scalar_prefetch = 0 : i64, scratch_operands = 3 : i64, tpu.core_type = #tpu.core_type<tc>, window_params = [{transform_indices = @transform_0, window_bounds = array<i64: 2, 4, 128>}, {transform_indices = @transform_1, window_bounds = array<i64: 2, 128>}, {transform_indices = @transform_2, window_bounds = array<i64: 1, 4, 1>}, {transform_indices = @transform_3, window_bounds = array<i64: 1, 4, 1>}, {transform_indices = @transform_4, window_bounds = array<i64: 1, 4, 1>}]} {
    %c0_i32 = arith.constant 0 : i32
    %0 = arith.cmpi eq, %arg1, %c0_i32 : i32
    %1 = arith.extui %0 : i1 to i32
    %c0_i32_0 = arith.constant 0 : i32
    %2 = arith.cmpi ne, %1, %c0_i32_0 : i32
    scf.if %2 {
      %cst_21 = arith.constant 0.000000e+00 : f32
      %27 = vector.broadcast %cst_21 : f32 to vector<4x128xf32>
      %c0_22 = arith.constant 0 : index
      %c0_23 = arith.constant 0 : index
      %28 = vector.load %arg7[%c0_22, %c0_23] : memref<4x128xf32, #tpu.memory_space<vmem>>, vector<4x128xf32>
      tpu.vector_store %arg7[%c0_22, %c0_23], %27 {strides = array<i32>} : memref<4x128xf32, #tpu.memory_space<vmem>>, vector<4x128xf32>,
      %cst_24 = arith.constant 0.000000e+00 : f32
      %29 = vector.broadcast %cst_24 : f32 to vector<4x128xf32>
      %c0_25 = arith.constant 0 : index
      %c0_26 = arith.constant 0 : index
      %30 = vector.load %arg8[%c0_25, %c0_26] : memref<4x128xf32, #tpu.memory_space<vmem>>, vector<4x128xf32>
      tpu.vector_store %arg8[%c0_25, %c0_26], %29 {strides = array<i32>} : memref<4x128xf32, #tpu.memory_space<vmem>>, vector<4x128xf32>,
      %cst_27 = arith.constant 0.000000e+00 : f32
      %31 = vector.broadcast %cst_27 : f32 to vector<4x128xf32>
      %c0_28 = arith.constant 0 : index
      %c0_29 = arith.constant 0 : index
      %32 = vector.load %arg9[%c0_28, %c0_29] : memref<4x128xf32, #tpu.memory_space<vmem>>, vector<4x128xf32>
      tpu.vector_store %arg9[%c0_28, %c0_29], %31 {strides = array<i32>} : memref<4x128xf32, #tpu.memory_space<vmem>>, vector<4x128xf32>,
    } else {
    }
    %c0 = arith.constant 0 : index
    %c0_1 = arith.constant 0 : index
    %c0_2 = arith.constant 0 : index
    %3 = vector.load %arg2[%c0, %c0_1, %c0_2] : memref<2x4x128xf32, #tpu.memory_space<vmem>>, vector<2x4x128xf32>
    %c0_3 = arith.constant 0 : index
    %c0_4 = arith.constant 0 : index
    %4 = vector.load %arg3[%c0_3, %c0_4] : memref<2x128xi32, #tpu.memory_space<vmem>>, vector<2x128xi32>
    %5 = tpu.iota {dimensions = array<i32: 1>} : vector<2x4x128xi32>
    %6 = vector.shape_cast %4 : vector<2x128xi32> to vector<2x1x128xi32>
    %7 = vector.broadcast %6 : vector<2x1x128xi32> to vector<2x4x128xi32>
    %8 = arith.cmpi eq, %5, %7 : vector<2x4x128xi32>
    %9 = arith.extui %8 : vector<2x4x128xi1> to vector<2x4x128xi32>
    %10 = arith.sitofp %9 : vector<2x4x128xi32> to vector<2x4x128xf32>
    %c0_5 = arith.constant 0 : index
    %c0_6 = arith.constant 0 : index
    %11 = vector.load %arg7[%c0_5, %c0_6] : memref<4x128xf32, #tpu.memory_space<vmem>>, vector<4x128xf32>
    %12 = arith.mulf %3, %10 : vector<2x4x128xf32>
    %cst = arith.constant dense<0.000000e+00> : vector<4x128xf32>
    %13 = vector.multi_reduction <add>, %12, %cst [0] : vector<2x4x128xf32> to vector<4x128xf32>
    %14 = arith.addf %11, %13 : vector<4x128xf32>
    %c0_7 = arith.constant 0 : index
    %c0_8 = arith.constant 0 : index
    %15 = vector.load %arg7[%c0_7, %c0_8] : memref<4x128xf32, #tpu.memory_space<vmem>>, vector<4x128xf32>
    tpu.vector_store %arg7[%c0_7, %c0_8], %14 {strides = array<i32>} : memref<4x128xf32, #tpu.memory_space<vmem>>, vector<4x128xf32>,
    %c0_9 = arith.constant 0 : index
    %c0_10 = arith.constant 0 : index
    %16 = vector.load %arg8[%c0_9, %c0_10] : memref<4x128xf32, #tpu.memory_space<vmem>>, vector<4x128xf32>
    %cst_11 = arith.constant dense<0.000000e+00> : vector<4x128xf32>
    %17 = vector.multi_reduction <add>, %3, %cst_11 [0] : vector<2x4x128xf32> to vector<4x128xf32>
    %18 = arith.addf %16, %17 : vector<4x128xf32>
    %c0_12 = arith.constant 0 : index
    %c0_13 = arith.constant 0 : index
    %19 = vector.load %arg8[%c0_12, %c0_13] : memref<4x128xf32, #tpu.memory_space<vmem>>, vector<4x128xf32>
    tpu.vector_store %arg8[%c0_12, %c0_13], %18 {strides = array<i32>} : memref<4x128xf32, #tpu.memory_space<vmem>>, vector<4x128xf32>,
    %c0_14 = arith.constant 0 : index
    %c0_15 = arith.constant 0 : index
    %20 = vector.load %arg9[%c0_14, %c0_15] : memref<4x128xf32, #tpu.memory_space<vmem>>, vector<4x128xf32>
    %cst_16 = arith.constant dense<0.000000e+00> : vector<4x128xf32>
    %21 = vector.multi_reduction <add>, %10, %cst_16 [0] : vector<2x4x128xf32> to vector<4x128xf32>
    %22 = arith.addf %20, %21 : vector<4x128xf32>
    %c0_17 = arith.constant 0 : index
    %c0_18 = arith.constant 0 : index
    %23 = vector.load %arg9[%c0_17, %c0_18] : memref<4x128xf32, #tpu.memory_space<vmem>>, vector<4x128xf32>
    tpu.vector_store %arg9[%c0_17, %c0_18], %22 {strides = array<i32>} : memref<4x128xf32, #tpu.memory_space<vmem>>, vector<4x128xf32>,
    %c0_i32_19 = arith.constant 0 : i32
    %24 = arith.cmpi eq, %arg1, %c0_i32_19 : i32
    %25 = arith.extui %24 : i1 to i32
    %c0_i32_20 = arith.constant 0 : i32
    %26 = arith.cmpi ne, %25, %c0_i32_20 : i32
    scf.if %26 {
      %c0_21 = arith.constant 0 : index
      %c0_22 = arith.constant 0 : index
      %27 = vector.load %arg7[%c0_21, %c0_22] : memref<4x128xf32, #tpu.memory_space<vmem>>, vector<4x128xf32>
      %cst_23 = arith.constant dense<0.000000e+00> : vector<4xf32>
      %28 = vector.multi_reduction <add>, %27, %cst_23 [1] : vector<4x128xf32> to vector<4xf32>
      %29 = vector.shape_cast %28 : vector<4xf32> to vector<4x1xf32>
      %30 = vector.shape_cast %29 : vector<4x1xf32> to vector<1x4x1xf32>
      %c0_24 = arith.constant 0 : index
      %c0_25 = arith.constant 0 : index
      %c0_26 = arith.constant 0 : index
      %31 = vector.load %arg4[%c0_24, %c0_25, %c0_26] : memref<1x4x1xf32, #tpu.memory_space<vmem>>, vector<1x4x1xf32>
      tpu.vector_store %arg4[%c0_24, %c0_25, %c0_26], %30 {strides = array<i32>} : memref<1x4x1xf32, #tpu.memory_space<vmem>>, vector<1x4x1xf32>,
      %c0_27 = arith.constant 0 : index
      %c0_28 = arith.constant 0 : index
      %32 = vector.load %arg8[%c0_27, %c0_28] : memref<4x128xf32, #tpu.memory_space<vmem>>, vector<4x128xf32>
      %cst_29 = arith.constant dense<0.000000e+00> : vector<4xf32>
      %33 = vector.multi_reduction <add>, %32, %cst_29 [1] : vector<4x128xf32> to vector<4xf32>
      %34 = vector.shape_cast %33 : vector<4xf32> to vector<4x1xf32>
      %35 = vector.shape_cast %34 : vector<4x1xf32> to vector<1x4x1xf32>
      %c0_30 = arith.constant 0 : index
      %c0_31 = arith.constant 0 : index
      %c0_32 = arith.constant 0 : index
      %36 = vector.load %arg5[%c0_30, %c0_31, %c0_32] : memref<1x4x1xf32, #tpu.memory_space<vmem>>, vector<1x4x1xf32>
      tpu.vector_store %arg5[%c0_30, %c0_31, %c0_32], %35 {strides = array<i32>} : memref<1x4x1xf32, #tpu.memory_space<vmem>>, vector<1x4x1xf32>,
      %c0_33 = arith.constant 0 : index
      %c0_34 = arith.constant 0 : index
      %37 = vector.load %arg9[%c0_33, %c0_34] : memref<4x128xf32, #tpu.memory_space<vmem>>, vector<4x128xf32>
      %cst_35 = arith.constant dense<0.000000e+00> : vector<4xf32>
      %38 = vector.multi_reduction <add>, %37, %cst_35 [1] : vector<4x128xf32> to vector<4xf32>
      %39 = vector.shape_cast %38 : vector<4xf32> to vector<4x1xf32>
      %40 = vector.shape_cast %39 : vector<4x1xf32> to vector<1x4x1xf32>
      %c0_36 = arith.constant 0 : index
      %c0_37 = arith.constant 0 : index
      %c0_38 = arith.constant 0 : index
      %41 = vector.load %arg6[%c0_36, %c0_37, %c0_38] : memref<1x4x1xf32, #tpu.memory_space<vmem>>, vector<1x4x1xf32>
      tpu.vector_store %arg6[%c0_36, %c0_37, %c0_38], %40 {strides = array<i32>} : memref<1x4x1xf32, #tpu.memory_space<vmem>>, vector<1x4x1xf32>,
    } else {
    }
    return
  }
  func.func @transform_0(%arg0: i32, %arg1: i32) -> (i32, i32, i32) {
    %c1_i32 = arith.constant 1 : i32
    %0 = arith.muli %arg0, %c1_i32 : i32
    %1 = arith.addi %0, %arg1 : i32
    %c0_i32 = arith.constant 0 : i32
    %c0_i32_0 = arith.constant 0 : i32
    %c0_i32_1 = arith.constant 0 : i32
    return %c0_i32, %c0_i32_0, %1 : i32, i32, i32
  }
  func.func @transform_1(%arg0: i32, %arg1: i32) -> (i32, i32) {
    %c1_i32 = arith.constant 1 : i32
    %0 = arith.muli %arg0, %c1_i32 : i32
    %1 = arith.addi %0, %arg1 : i32
    %c0_i32 = arith.constant 0 : i32
    %c0_i32_0 = arith.constant 0 : i32
    return %c0_i32, %1 : i32, i32
  }
  func.func @transform_2(%arg0: i32, %arg1: i32) -> (i32, i32, i32) {
    %c0_i32 = arith.constant 0 : i32
    %c0_i32_0 = arith.constant 0 : i32
    %c0_i32_1 = arith.constant 0 : i32
    return %arg0, %c0_i32, %c0_i32_0 : i32, i32, i32
  }
  func.func @transform_3(%arg0: i32, %arg1: i32) -> (i32, i32, i32) {
    %c0_i32 = arith.constant 0 : i32
    %c0_i32_0 = arith.constant 0 : i32
    %c0_i32_1 = arith.constant 0 : i32
    return %arg0, %c0_i32, %c0_i32_0 : i32, i32, i32
  }
  func.func @transform_4(%arg0: i32, %arg1: i32) -> (i32, i32, i32) {
    %c0_i32 = arith.constant 0 : i32
    %c0_i32_0 = arith.constant 0 : i32
    %c0_i32_1 = arith.constant 0 : i32
    return %arg0, %c0_i32, %c0_i32_0 : i32, i32, i32
  }
}

</mosaic_0001>

<llo_original>
// kernel: tpu_custom_call.1
$region0: #{tpu_custom_call.1}
  #allocation0 [shape = 'u32[]', space=smem, size = 0x4, offset = 0x4, fixed_abs, tag = 'smem constant byte address 0x4 - core index']
  #allocation1 [shape = 'u32[72,128]{1,0:T(1,128)}', space=vmem, size = 0x9000, scoped, tag = 'internal scratch']
  #allocation2 [shape = 'f32[4,128]{1,0:T(4,128)}', space=vmem, size = 0x800, scoped, tag = 'scratch operand']
  #allocation3 [shape = 'f32[4,128]{1,0:T(4,128)}', space=vmem, size = 0x800, scoped, tag = 'scratch operand']
  #allocation4 [shape = 'f32[4,128]{1,0:T(4,128)}', space=vmem, size = 0x800, scoped, tag = 'scratch operand']
  %s0 = inlined_call_operand.hbm [shape: f32[2,4,256], index: 0, kind: input, shape index: {}]
  %s1 = inlined_call_operand.hbm [shape: s32[2,256], index: 1, kind: input, shape index: {}]
  %s2 = inlined_call_operand.vmem [shape: f32[2,4,1], index: 2, kind: output, shape index: {0}]
  %s3 = inlined_call_operand.vmem [shape: f32[2,4,1], index: 3, kind: output, shape index: {1}]
  %s4 = inlined_call_operand.vmem [shape: f32[2,4,1], index: 4, kind: output, shape index: {2}]
  %5 = xla_tuple %s2, %s3, %s4
  %s6 = sld [smem:[#allocation0]]
  $region73: #{tpu_custom_call.1} parent=0
    _
  %s8 = ssub.s32 1, %s6
  %s9 = scalar_select 0, %s8, %s6
  $region1: #{tpu_custom_call.1} parent=0
    #allocation5 [shape = 'u8[8192]{0}', space=vmem, size = 0x2000, scoped, tag = 'input window, operand 0']
    #allocation6 [shape = 's32[2]{0}', space=sflag, size = 0x8, scoped, tag = 'scoped memory for tpu_custom_call.1']
    #allocation7 [shape = 'u8[2048]{0}', space=vmem, size = 0x800, scoped, tag = 'input window, operand 1']
    #allocation8 [shape = 's32[2]{0}', space=sflag, size = 0x8, scoped, tag = 'scoped memory for tpu_custom_call.1']
    %10 = vsyncpa [#allocation6], 0
    %s11 = scalar_lea.sflag [#allocation6], 1
    %12 = vsyncpa %s11, 0
    %13 = vsyncpa [#allocation8], 0
    %s14 = scalar_lea.sflag [#allocation8], 1
    %15 = vsyncpa %s14, 0
    loop: start=0, step=1, limit=4
    $region2: #{tpu_custom_call.1} parent=1 // loop_pre_header
      _
    $region3: #{tpu_custom_call.1} parent=1 // loop_header
      %s17 = sphi 0, %s21
      %p18 = scmp.ge.s32.totalorder %s17, 4
      %s24 = sphi 0, %s36
      %s25 = sphi 0, %s32
      %s26 = sphi 0, %s24
      %s27 = sphi 0, %s25
      %s28 = sphi 0, %s26
      %s29 = sphi 0, %s27
      %s41 = sphi 0, %s43
      %s44 = sphi 0, %s41
      %s45 = sphi 0, %s44
      %s61 = sphi 0, %s45
      %s69 = sphi 0, %s71
      %s72 = sphi 0, %s69
      %s73 = sphi 0, %s72
      %s89 = sphi 0, %s73
      %s95 = sphi 0, %s97
      %s98 = sphi 0, %s95
      %s99 = sphi 0, %s98
      %s115 = sphi 0, %s99
      %s121 = sphi 0, %s123
      %s124 = sphi 0, %s121
      %s125 = sphi 0, %s124
      %s141 = sphi 0, %s125
      %s147 = sphi 0, %s149
      %s150 = sphi 0, %s147
      %s151 = sphi 0, %s150
      %s167 = sphi 0, %s151
    $region4: #{tpu_custom_call.1} parent=1 // loop_header_branch
      %20 = sbr.rel (%p18) target = $region8
    $region5: #{tpu_custom_call.1} parent=1 // loop_body
      %s22 = ssub.s32 %s17, 1
      %s23 = ssub.s32 %s17, 2
      %s30 = sadd.s32 1, %s25
      %p31 = scmp.ge.s32.totalorder %s30, 1
      %s32 = scalar_select %p31, 0, %s30
      %s33 = sadd.s32 1, %s24
      %s34 = scalar_select %p31, %s33, %s24
      %p35 = scmp.ge.s32.totalorder %s34, 2
      %s36 = scalar_select %p35, 0, %s34
      %s37 = sadd.s32 %s24, %s25
      %s38 = sadd.s32 %s36, %s32
      %s39 = ssub.s32 %s37, %s38
      %p40 = scmp.eq.s32.totalorder %s39, 0
      %s42 = sadd.s32 %s41, 1
      %s43 = scalar_select %p40, %s41, %s42
      %p46 = pneg %p40
      %p47 = scmp.eq.s32.totalorder %s17, 1
      %p48 = por %p46, %p47
      %p49 = scmp.ne.s32.totalorder %s41, %s44
      %p50 = scmp.eq.s32.totalorder %s17, 0
      %p51 = por %p49, %p50
      %p52 = scmp.ne.s32.totalorder %s41, %s44
      %p53 = scmp.eq.s32.totalorder %s22, 1
      %p54 = por %p52, %p53
      %p55 = scmp.ne.s32.totalorder %s44, %s45
      %p56 = scmp.eq.s32.totalorder %s22, 0
      %p57 = por %p55, %p56
      %p58 = scmp.ne.s32.totalorder %s44, %s45
      %p59 = scmp.eq.s32.totalorder %s23, 1
      %p60 = por %p58, %p59
      %p62 = scmp.ne.s32.totalorder %s45, %s61
      %p63 = scmp.eq.s32.totalorder %s23, 0
      %p64 = por %p62, %p63
      %s65 = sadd.s32 %s24, %s25
      %s66 = sadd.s32 %s36, %s32
      %s67 = ssub.s32 %s65, %s66
      %p68 = scmp.eq.s32.totalorder %s67, 0
      %s70 = sadd.s32 %s69, 1
      %s71 = scalar_select %p68, %s69, %s70
      %p74 = pneg %p68
      %p75 = scmp.eq.s32.totalorder %s17, 1
      %p76 = por %p74, %p75
      %p77 = scmp.ne.s32.totalorder %s69, %s72
      %p78 = scmp.eq.s32.totalorder %s17, 0
      %p79 = por %p77, %p78
      %p80 = scmp.ne.s32.totalorder %s69, %s72
      %p81 = scmp.eq.s32.totalorder %s22, 1
      %p82 = por %p80, %p81
      %p83 = scmp.ne.s32.totalorder %s72, %s73
      %p84 = scmp.eq.s32.totalorder %s22, 0
      %p85 = por %p83, %p84
      %p86 = scmp.ne.s32.totalorder %s72, %s73
      %p87 = scmp.eq.s32.totalorder %s23, 1
      %p88 = por %p86, %p87
      %p90 = scmp.ne.s32.totalorder %s73, %s89
      %p91 = scmp.eq.s32.totalorder %s23, 0
      %p92 = por %p90, %p91
      %s93 = ssub.s32 %s24, %s36
      %p94 = scmp.eq.s32.totalorder %s93, 0
      %s96 = sadd.s32 %s95, 1
      %s97 = scalar_select %p94, %s95, %s96
      %p100 = pneg %p94
      %p101 = scmp.eq.s32.totalorder %s17, 1
      %p102 = por %p100, %p101
      %p103 = scmp.ne.s32.totalorder %s95, %s98
      %p104 = scmp.eq.s32.totalorder %s17, 0
      %p105 = por %p103, %p104
      %p106 = scmp.ne.s32.totalorder %s95, %s98
      %p107 = scmp.eq.s32.totalorder %s22, 1
      %p108 = por %p106, %p107
      %p109 = scmp.ne.s32.totalorder %s98, %s99
      %p110 = scmp.eq.s32.totalorder %s22, 0
      %p111 = por %p109, %p110
      %p112 = scmp.ne.s32.totalorder %s98, %s99
      %p113 = scmp.eq.s32.totalorder %s23, 1
      %p114 = por %p112, %p113
      %p116 = scmp.ne.s32.totalorder %s99, %s115
      %p117 = scmp.eq.s32.totalorder %s23, 0
      %p118 = por %p116, %p117
      %s119 = ssub.s32 %s24, %s36
      %p120 = scmp.eq.s32.totalorder %s119, 0
      %s122 = sadd.s32 %s121, 1
      %s123 = scalar_select %p120, %s121, %s122
      %p126 = pneg %p120
      %p127 = scmp.eq.s32.totalorder %s17, 1
      %p128 = por %p126, %p127
      %p129 = scmp.ne.s32.totalorder %s121, %s124
      %p130 = scmp.eq.s32.totalorder %s17, 0
      %p131 = por %p129, %p130
      %p132 = scmp.ne.s32.totalorder %s121, %s124
      %p133 = scmp.eq.s32.totalorder %s22, 1
      %p134 = por %p132, %p133
      %p135 = scmp.ne.s32.totalorder %s124, %s125
      %p136 = scmp.eq.s32.totalorder %s22, 0
      %p137 = por %p135, %p136
      %p138 = scmp.ne.s32.totalorder %s124, %s125
      %p139 = scmp.eq.s32.totalorder %s23, 1
      %p140 = por %p138, %p139
      %p142 = scmp.ne.s32.totalorder %s125, %s141
      %p143 = scmp.eq.s32.totalorder %s23, 0
      %p144 = por %p142, %p143
      %s145 = ssub.s32 %s24, %s36
      %p146 = scmp.eq.s32.totalorder %s145, 0
      %s148 = sadd.s32 %s147, 1
      %s149 = scalar_select %p146, %s147, %s148
      %p152 = pneg %p146
      %p153 = scmp.eq.s32.totalorder %s17, 1
      %p154 = por %p152, %p153
      %p155 = scmp.ne.s32.totalorder %s147, %s150
      %p156 = scmp.eq.s32.totalorder %s17, 0
      %p157 = por %p155, %p156
      %p158 = scmp.ne.s32.totalorder %s147, %s150
      %p159 = scmp.eq.s32.totalorder %s22, 1
      %p160 = por %p158, %p159
      %p161 = scmp.ne.s32.totalorder %s150, %s151
      %p162 = scmp.eq.s32.totalorder %s22, 0
      %p163 = por %p161, %p162
      %p164 = scmp.ne.s32.totalorder %s150, %s151
      %p165 = scmp.eq.s32.totalorder %s23, 1
      %p166 = por %p164, %p165
      %p168 = scmp.ne.s32.totalorder %s151, %s167
      %p169 = scmp.eq.s32.totalorder %s23, 0
      %p170 = por %p168, %p169
      %p171 = scmp.le.s32.totalorder 1, %s17
      %p172 = scmp.lt.s32.totalorder %s17, 3
      %p173 = pnand %p171, %p172
      %p174 = pneg %p173
      // Predicated region
      $region9: #{tpu_custom_call.1} parent=5 // pred_check
        _
      $region10: #{tpu_custom_call.1} parent=5 // pred_check_branch
        %176 = sbr.rel (%p173) target = $region12
      $region11: #{tpu_custom_call.1} parent=5 // pred_region
        %s177 = ssub.s32 %s17, 1
      $region12: #{tpu_custom_call.1} parent=5 // pred_fallthru
        _
      %p178 = scmp.lt.s32.totalorder %s17, 2
      // Predicated region
      $region13: #{tpu_custom_call.1} parent=5 // pred_check
        %p179 = pneg %p178
      $region14: #{tpu_custom_call.1} parent=5 // pred_check_branch
        %181 = sbr.rel (%p179) target = $region16
      $region15: #{tpu_custom_call.1} parent=5 // pred_region
        // Predicated region
        $region17: #{tpu_custom_call.1} parent=15 // pred_check
          %p182 = pneg %p51
        $region18: #{tpu_custom_call.1} parent=15 // pred_check_branch
          %184 = sbr.rel (%p182) target = $region20
        $region19: #{tpu_custom_call.1} parent=15 // pred_region
          %s185 = sand.u32 %s41, 1
          %s186 = scalar_lea.sflag [#allocation6], %s185
          %s187 = sand.u32 %s41, 1
          %s188 = smul.addr %s187, 8
          %s189 = scalar_lea.vmem [#allocation5], %s188
          %s190 = sadd.s32 %s24, %s25
          %192 = vsyncadd %s186, 0
          %s193 = smul.addr %s190, 4
          %s194 = scalar_lea.hbm %s0, %s193
          %s195 = sshll.u32 %s194, 4
          %s196 = int_to_ptr.hbm [resolvable:$true] %s195
          %s197 = sshll.u32 %s189, 4
          %s198 = int_to_ptr.vmem [resolvable:$true] %s197
          %203 = dma.hbm_to_vmem [thread:$0]  %s196, 128, %s198, %s186, 128, 64, 4
        $region20: #{tpu_custom_call.1} parent=15 // pred_fallthru
          _
        // Predicated region
        $region21: #{tpu_custom_call.1} parent=15 // pred_check
          %p204 = pneg %p79
        $region22: #{tpu_custom_call.1} parent=15 // pred_check_branch
          %206 = sbr.rel (%p204) target = $region24
        $region23: #{tpu_custom_call.1} parent=15 // pred_region
          %s207 = sand.u32 %s69, 1
          %s208 = scalar_lea.sflag [#allocation8], %s207
          %s209 = sand.u32 %s69, 1
          %s210 = smul.addr %s209, 2
          %s211 = scalar_lea.vmem [#allocation7], %s210
          %s212 = sadd.s32 %s24, %s25
          %214 = vsyncadd %s208, 0
          %s215 = smul.addr %s212, 2
          %s216 = scalar_lea.hbm %s1, %s215
          %s218 = sshll.u32 %s216, 4
          %s219 = int_to_ptr.hbm [resolvable:$true] %s218
          %s220 = sshll.u32 %s211, 4
          %s221 = int_to_ptr.vmem [resolvable:$true] %s220
          %223 = dma.hbm_to_vmem [thread:$0]  %s219, 32, %s221, %s208
        $region24: #{tpu_custom_call.1} parent=15 // pred_fallthru
          _
      $region16: #{tpu_custom_call.1} parent=5 // pred_fallthru
        _
      %p224 = scmp.le.s32.totalorder 1, %s17
      %p225 = scmp.lt.s32.totalorder %s17, 3
      %p226 = pnand %p224, %p225
      %p227 = pneg %p226
      // Predicated region
      $region25: #{tpu_custom_call.1} parent=5 // pred_check
        _
      $region26: #{tpu_custom_call.1} parent=5 // pred_check_branch
        %229 = sbr.rel (%p226) target = $region28
      $region27: #{tpu_custom_call.1} parent=5 // pred_region
        %s230 = ssub.s32 %s17, 1
        %s231 = sand.u32 %s44, 1
        %s232 = scalar_lea.sflag [#allocation6], %s231
        %s233 = sand.u32 %s44, 1
        %s234 = smul.addr %s233, 8
        %s235 = scalar_lea.vmem [#allocation5], %s234
        // Predicated region
        $region29: #{tpu_custom_call.1} parent=27 // pred_check
          %p236 = pneg %p57
        $region30: #{tpu_custom_call.1} parent=27 // pred_check_branch
          %238 = sbr.rel (%p236) target = $region32
        $region31: #{tpu_custom_call.1} parent=27 // pred_region
          %240 = dma.done %s232, 128
        $region32: #{tpu_custom_call.1} parent=27 // pred_fallthru
          _
        %s241 = sand.u32 %s72, 1
        %s242 = scalar_lea.sflag [#allocation8], %s241
        %s243 = sand.u32 %s72, 1
        %s244 = smul.addr %s243, 2
        %s245 = scalar_lea.vmem [#allocation7], %s244
        // Predicated region
        $region33: #{tpu_custom_call.1} parent=27 // pred_check
          %p246 = pneg %p85
        $region34: #{tpu_custom_call.1} parent=27 // pred_check_branch
          %248 = sbr.rel (%p246) target = $region36
        $region35: #{tpu_custom_call.1} parent=27 // pred_region
          %250 = dma.done %s242, 32
        $region36: #{tpu_custom_call.1} parent=27 // pred_fallthru
          _
        %s251 = sand.u32 %s44, 1
        %s252 = scalar_lea.sflag [#allocation6], %s251
        %s253 = sand.u32 %s44, 1
        %s254 = smul.addr %s253, 8
        %s255 = scalar_lea.vmem [#allocation5], %s254
        %p256 = pneg %p57
        %p257 = pneg %p54
        %s258 = sand.u32 %s72, 1
        %s259 = scalar_lea.sflag [#allocation8], %s258
        %s260 = sand.u32 %s72, 1
        %s261 = smul.addr %s260, 2
        %s262 = scalar_lea.vmem [#allocation7], %s261
        %p263 = pneg %p85
        %p264 = pneg %p82
        %p265 = pneg %p111
        %p266 = pneg %p108
        %p267 = scmp.lt.s32.totalorder %s26, 1
        %s268 = scalar_select %p267, %s26, 1
        %s269 = smul.addr %s268, 4
        %s270 = scalar_lea.vmem %s2, %s269
        %p271 = pneg %p137
        %p272 = pneg %p134
        %p273 = scmp.lt.s32.totalorder %s26, 1
        %s274 = scalar_select %p273, %s26, 1
        %s275 = smul.addr %s274, 4
        %s276 = scalar_lea.vmem %s3, %s275
        %p277 = pneg %p163
        %p278 = pneg %p160
        %p279 = scmp.lt.s32.totalorder %s26, 1
        %s280 = scalar_select %p279, %s26, 1
        %s281 = smul.addr %s280, 4
        %s282 = scalar_lea.vmem %s4, %s281
        %s283 = sadd.s32 %s26, %s27
        %s284 = sadd.s32 %s26, %s27
        %p285 = scmp.lt.s32.totalorder %s26, 1
        %s286 = scalar_select %p285, %s26, 1
        %s287 = smul.addr %s286, 4
        %s288 = scalar_lea.vmem %s2, %s287
        %p289 = scmp.lt.s32.totalorder %s26, 1
        %s290 = scalar_select %p289, %s26, 1
        %s291 = smul.addr %s290, 4
        %s292 = scalar_lea.vmem %s3, %s291
        %p293 = scmp.lt.s32.totalorder %s26, 1
        %s294 = scalar_select %p293, %s26, 1
        %s295 = smul.addr %s294, 4
        %s296 = scalar_lea.vmem %s4, %s295
        %p297 = scmp.eq.s32.totalorder %s27, 0
        // Predicated region
        $region37: #{tpu_custom_call.1} parent=27 // pred_check
          %p298 = pneg %p297
        $region38: #{tpu_custom_call.1} parent=27 // pred_check_branch
          %300 = sbr.rel (%p298) target = $region40
        $region39: #{tpu_custom_call.1} parent=27 // pred_region
          %301 = vst [vmem:[#allocation2] sm:$0xf] 0.0
          %302 = vst [vmem:[#allocation3] sm:$0xf] 0.0
          %303 = vst [vmem:[#allocation4] sm:$0xf] 0.0
        $region40: #{tpu_custom_call.1} parent=27 // pred_fallthru
          _
        %v304 = vld [vmem:[%s235] sm:$0xf]
        %v305 = vld [vmem:[%s235 + $0x4] sm:$0xf]
        %v306 = vld [vmem:[%s245] sm:$0x3]
        %v307 = vlaneseq
        %v308 = vshrl.u32 %v307, 7
        %v309 = vrot.slane %v306, 1
        %v310 = vperm.slane %v306, 0
        %v311 = vperm.slane %v309, 0
        %vm312 = vcmp.eq.s32.totalorder %v308, %v310
        %vm313 = vcmp.eq.s32.totalorder %v308, %v311
        %v314 = vsel %vm312, 1, 0
        %v315 = vsel %vm313, 1, 0
        %v316 = vcvt.s32.f32 %v314
        %v317 = vcvt.s32.f32 %v315
        %v318 = vld [vmem:[#allocation2] sm:$0xf]
        %v319 = vmul.f32 %v304, %v316
        %v320 = vmul.f32 %v305, %v317
        %vm321 = vcmask 1043456
        %v322 = vsel %vm321, %v319, 0.0
        %v323 = vsel %vm321, %v320, 0.0
        %v324 = vadd.f32 %v322, %v323
        %v325 = vadd.f32 %v318, %v324
        %326 = vst [vmem:[#allocation2] sm:$0xf] %v325
        %v327 = vld [vmem:[#allocation3] sm:$0xf]
        %v328 = vsel %vm321, %v304, 0.0
        %v329 = vsel %vm321, %v305, 0.0
        %v330 = vadd.f32 %v328, %v329
        %v331 = vadd.f32 %v327, %v330
        %332 = vst [vmem:[#allocation3] sm:$0xf] %v331
        %v333 = vld [vmem:[#allocation4] sm:$0xf]
        %v334 = vsel %vm321, %v316, 0.0
        %v335 = vsel %vm321, %v317, 0.0
        %v336 = vadd.f32 %v334, %v335
        %v337 = vadd.f32 %v333, %v336
        %338 = vst [vmem:[#allocation4] sm:$0xf] %v337
        // Predicated region
        $region41: #{tpu_custom_call.1} parent=27 // pred_check
          %p339 = pneg %p297
        $region42: #{tpu_custom_call.1} parent=27 // pred_check_branch
          %341 = sbr.rel (%p339) target = $region44
        $region43: #{tpu_custom_call.1} parent=27 // pred_region
          %v342 = vld [vmem:[#allocation2] sm:$0xf]
          %v343 = vsel %vm321, %v342, 0.0
          %344 = vadd.xlane.f32.xlu0 %v343
          %v345 = vpop.xlane.xlu0 %344
          %vm346 = vcmask 3072
          %347 = vst.msk [vmem:[%s288] sm:$0xf] %vm346, %v345
          %v348 = vld [vmem:[#allocation3] sm:$0xf]
          %v349 = vsel %vm321, %v348, 0.0
          %350 = vadd.xlane.f32.xlu0 %v349
          %v351 = vpop.xlane.xlu0 %350
          %352 = vst.msk [vmem:[%s292] sm:$0xf] %vm346, %v351
          %v353 = vld [vmem:[#allocation4] sm:$0xf]
          %v354 = vsel %vm321, %v353, 0.0
          %355 = vadd.xlane.f32.xlu0 %v354
          %v356 = vpop.xlane.xlu0 %355
          %357 = vst.msk [vmem:[%s296] sm:$0xf] %vm346, %v356
        $region44: #{tpu_custom_call.1} parent=27 // pred_fallthru
          _
        %p358 = scmp.lt.s32.totalorder %s26, 1
        %s359 = scalar_select %p358, %s26, 1
        %s360 = smul.addr %s359, 4
        %s361 = scalar_lea.vmem %s2, %s360
        %p362 = scmp.lt.s32.totalorder %s26, 1
        %s363 = scalar_select %p362, %s26, 1
        %s364 = smul.addr %s363, 4
        %s365 = scalar_lea.vmem %s3, %s364
        %p366 = scmp.lt.s32.totalorder %s26, 1
        %s367 = scalar_select %p366, %s26, 1
        %s368 = smul.addr %s367, 4
        %s369 = scalar_lea.vmem %s4, %s368
        // Predicated region
        $region45: #{tpu_custom_call.1} parent=27 // pred_check
          %p370 = pneg %p108
        $region46: #{tpu_custom_call.1} parent=27 // pred_check_branch
          %372 = sbr.rel (%p370) target = $region48
        $region47: #{tpu_custom_call.1} parent=27 // pred_region
          _
        $region48: #{tpu_custom_call.1} parent=27 // pred_fallthru
          _
        // Predicated region
        $region49: #{tpu_custom_call.1} parent=27 // pred_check
          %p373 = pneg %p134
        $region50: #{tpu_custom_call.1} parent=27 // pred_check_branch
          %375 = sbr.rel (%p373) target = $region52
        $region51: #{tpu_custom_call.1} parent=27 // pred_region
          _
        $region52: #{tpu_custom_call.1} parent=27 // pred_fallthru
          _
        // Predicated region
        $region53: #{tpu_custom_call.1} parent=27 // pred_check
          %p376 = pneg %p160
        $region54: #{tpu_custom_call.1} parent=27 // pred_check_branch
          %378 = sbr.rel (%p376) target = $region56
        $region55: #{tpu_custom_call.1} parent=27 // pred_region
          _
        $region56: #{tpu_custom_call.1} parent=27 // pred_fallthru
          _
      $region28: #{tpu_custom_call.1} parent=5 // pred_fallthru
        _
      %p379 = scmp.le.s32.totalorder 2, %s17
      // Predicated region
      $region57: #{tpu_custom_call.1} parent=5 // pred_check
        %p380 = pneg %p379
      $region58: #{tpu_custom_call.1} parent=5 // pred_check_branch
        %382 = sbr.rel (%p380) target = $region60
      $region59: #{tpu_custom_call.1} parent=5 // pred_region
        %s383 = ssub.s32 %s17, 2
        // Predicated region
        $region61: #{tpu_custom_call.1} parent=59 // pred_check
          %p384 = pneg %p114
        $region62: #{tpu_custom_call.1} parent=59 // pred_check_branch
          %386 = sbr.rel (%p384) target = $region64
        $region63: #{tpu_custom_call.1} parent=59 // pred_region
          %p387 = scmp.lt.s32.totalorder %s28, 1
          %s388 = scalar_select %p387, %s28, 1
          %s389 = smul.addr %s388, 4
          %s390 = scalar_lea.vmem %s2, %s389
        $region64: #{tpu_custom_call.1} parent=59 // pred_fallthru
          _
        // Predicated region
        $region65: #{tpu_custom_call.1} parent=59 // pred_check
          %p391 = pneg %p140
        $region66: #{tpu_custom_call.1} parent=59 // pred_check_branch
          %393 = sbr.rel (%p391) target = $region68
        $region67: #{tpu_custom_call.1} parent=59 // pred_region
          %p394 = scmp.lt.s32.totalorder %s28, 1
          %s395 = scalar_select %p394, %s28, 1
          %s396 = smul.addr %s395, 4
          %s397 = scalar_lea.vmem %s3, %s396
        $region68: #{tpu_custom_call.1} parent=59 // pred_fallthru
          _
        // Predicated region
        $region69: #{tpu_custom_call.1} parent=59 // pred_check
          %p398 = pneg %p166
        $region70: #{tpu_custom_call.1} parent=59 // pred_check_branch
          %400 = sbr.rel (%p398) target = $region72
        $region71: #{tpu_custom_call.1} parent=59 // pred_region
          %p401 = scmp.lt.s32.totalorder %s28, 1
          %s402 = scalar_select %p401, %s28, 1
          %s403 = smul.addr %s402, 4
          %s404 = scalar_lea.vmem %s4, %s403
        $region72: #{tpu_custom_call.1} parent=59 // pred_fallthru
          _
      $region60: #{tpu_custom_call.1} parent=5 // pred_fallthru
        _
    $region6: #{tpu_custom_call.1} parent=1 // loop_footer
      %s21 = sadd.s32 1, %s17
    $region7: #{tpu_custom_call.1} parent=1 // loop_footer_branch
      %16 = sbr.rel target = $region3
    $region8: #{tpu_custom_call.1} parent=1 // loop_exit
      _
    %405 = vsyncpa [#allocation6], 1
    %s406 = scalar_lea.sflag [#allocation6], 1
    %407 = vsyncpa %s406, 1
    %408 = vsyncpa [#allocation8], 1
    %s409 = scalar_lea.sflag [#allocation8], 1
    %410 = vsyncpa %s409, 1

</llo_original>
